<compile_context>
chip_gen: v5e
topology: v5e:2x2
jax: 0.10.0
libtpu: 0.0.40
codegen_flags: <defaults>
</compile_context>

<pallas_src>
import math
import functools

import jax
import jax.numpy as jnp
import numpy as np
from jax.experimental import pallas as pl
from jax.experimental.pallas import tpu as pltpu


def _round_up(n: int, m: int) -> int:
    return ((n + m - 1) // m) * m


# ---------------------------------------------------------------------------
# Parameter construction (deterministic, in-script)
# ---------------------------------------------------------------------------
def sinusoidal_table(c_in: int, d_model: int) -> np.ndarray:
    """FixedEmbedding weight: sin/cos interleaved table of shape (c_in, d_model)."""
    w = np.zeros((c_in, d_model), dtype=np.float32)
    position = np.arange(0, c_in, dtype=np.float32)[:, None]
    div_term = np.exp(
        np.arange(0, d_model, 2, dtype=np.float32) * -(math.log(10000.0) / d_model)
    )
    w[:, 0::2] = np.sin(position * div_term)
    w[:, 1::2] = np.cos(position * div_term)[:, : w[:, 1::2].shape[1]]
    return w


def make_params(c_in: int, d_model: int, key) -> dict:
    # TokenEmbedding conv weight (d_model, c_in, 3): kaiming_normal_, fan_in,
    # nonlinearity='leaky_relu' (PyTorch default a=0 -> gain=sqrt(2)).
    fan_in = c_in * 3
    std = math.sqrt(2.0) / math.sqrt(fan_in)
    w_conv = std * jax.random.normal(key, (d_model, c_in, 3), dtype=jnp.float32)

    # Fold conv taps into matmul rows: y[t] = sum_k x[(t-1+k)%L] @ W_k^T.
    w_taps = jnp.concatenate(
        [w_conv[:, :, 0].T, w_conv[:, :, 1].T, w_conv[:, :, 2].T], axis=0
    )  # (3*c_in, d_model)

    # TemporalEmbedding (fixed, freq='h'): month(13), day(32), weekday(7), hour(24).
    table_np = np.concatenate(
        [
            sinusoidal_table(13, d_model),
            sinusoidal_table(32, d_model),
            sinusoidal_table(7, d_model),
            sinusoidal_table(24, d_model),
        ],
        axis=0,
    )  # (76, d_model)
    table = jnp.asarray(table_np)

    # Single fused weight for one MXU pass: rows = [W0^T; W1^T; W2^T; tables].
    w_fused = jnp.concatenate([w_taps, table], axis=0)  # (3C + 76, d_model)

    # Lane-dense output: pad d_model up to a multiple of 128 ONLY if needed.
    d_pad = _round_up(d_model, 128)
    if d_pad != d_model:
        w_fused = jnp.pad(w_fused, ((0, 0), (0, d_pad - d_model)))

    # x_mark columns are [month, day, weekday, hour] -> offsets into the
    # concatenated table (static Python ints, baked into the kernel trace).
    offsets_py = (0, 13, 13 + 32, 13 + 32 + 7)

    return dict(
        w_conv=w_conv,
        table=table,
        w_fused=w_fused,
        offsets_py=offsets_py,
        d_model=d_model,
    )


# ---------------------------------------------------------------------------
# Pallas kernel: one fused matmul per (TM, ·) tile of flattened (B*L) rows
# ---------------------------------------------------------------------------
def _embed_kernel(x3_ref, mark_ref, w_ref, out_ref, *, offsets, compute_dtype):
    # x3_ref   : (TM, 3C)    f32  -- [x[t-1] | x[t] | x[t+1]] (circular, per batch)
    # mark_ref : (TM, F)     i32  -- raw time-feature indices
    # w_ref    : (3C+T, Dp)  f32/bf16 -- fused conv taps + sinusoidal tables (resident)
    # out_ref  : (TM, Dp)    out_dtype -- lane-dense (Dp % 128 == 0)
    tm = x3_ref.shape[0]
    k3 = x3_ref.shape[1]
    t_rows = w_ref.shape[0] - k3  # 76 table rows

    idx = mark_ref[...]  # (TM, F) int32
    iota = jax.lax.broadcasted_iota(jnp.int32, (tm, t_rows), 1)

    # Multi-hot (TM, T) built as one OR-reduce of integer compares (ranges are
    # disjoint), cast to float exactly once.  The table gather then becomes
    # part of the single MXU contraction below.
    hit = iota == (idx[:, 0:1] + offsets[0])
    for f in range(1, idx.shape[1]):
        hit = hit | (iota == (idx[:, f : f + 1] + offsets[f]))
    multi_hot = hit.astype(compute_dtype)

    # Fused input row: [x3 | multi_hot]  -> one K≈(3C+76) matmul, f32 accumulate.
    fused = jnp.concatenate(
        [x3_ref[...].astype(compute_dtype), multi_hot], axis=-1
    )  # (TM, 3C+T)

    out_ref[...] = jnp.dot(
        fused, w_ref[...], preferred_element_type=jnp.float32
    ).astype(out_ref.dtype)


def _tm_cap(c_in: int, n_feat: int, d_pad: int) -> int:
    """Largest TM whose double-buffered per-step VMEM footprint stays ~<=12 MiB
    (safe under the smallest default scoped-VMEM limit on every generation)."""
    lane = 128
    per_row_bytes = 4 * 2 * (
        _round_up(3 * c_in, lane) + _round_up(n_feat, lane) + d_pad
    )
    weight_bytes = 2 * (3 * c_in + 76) * d_pad * 4  # double-buffered resident weight
    budget = 12 * 1024 * 1024 - weight_bytes
    return max(8, budget // per_row_bytes)


def _pick_tm(m: int, cap: int):
    """Pick TM (multiple of 8) dividing M when possible (no row pad / no row
    slice); prefer >=2 grid steps so both v7x TensorCores get work."""
    cap = max(8, min(cap, 2048))
    best = None
    for tm in range(8, min(cap, m) + 1, 8):
        if m % tm == 0:
            if best is None:
                best = tm
            if m // tm >= 2:
                best = tm  # largest divisor that still leaves >=2 grid steps
    if best is not None:
        return best, m
    # Fallback (M not a multiple of 8): pad rows and slice afterwards.
    tm = min(cap, _round_up(m, 8))
    return tm, _round_up(m, tm)


def data_embedding_wo_pos(
    x,
    x_mark,
    params,
    *,
    tm=None,
    compute_dtype=jnp.float32,   # jnp.bfloat16 -> bf16 MXU path (f32 accumulation)
    out_dtype=jnp.float32,       # bf16 halves writeback if downstream accepts it
):
    """x: (B, L, c_in) f32; x_mark: (B, L, 4) int32 -> (B, L, d_model)."""
    B, L, C = x.shape
    F = x_mark.shape[-1]
    w_fused = params["w_fused"]  # (3C+76, Dpad) f32
    K, d_pad = w_fused.shape
    D = params["d_model"]
    if w_fused.dtype != compute_dtype:
        w_fused = w_fused.astype(compute_dtype)

    M = B * L

    # Single contiguous im2col slab: circular shifts built per-(B, L) BEFORE
    # flattening, so the wrap stays inside each batch row; one DMA stream.
    x3 = jnp.concatenate(
        [jnp.roll(x, 1, axis=1), x, jnp.roll(x, -1, axis=1)], axis=-1
    ).reshape(M, 3 * C)
    marks = x_mark.astype(jnp.int32).reshape(M, F)

    if tm is None:
        tm, m_pad = _pick_tm(M, _tm_cap(C, F, d_pad))
    else:
        m_pad = _round_up(M, tm)
    if m_pad != M:
        pad = m_pad - M
        x3 = jnp.pad(x3, ((0, pad), (0, 0)))
        marks = jnp.pad(marks, ((0, pad), (0, 0)))

    kernel = functools.partial(
        _embed_kernel, offsets=params["offsets_py"], compute_dtype=compute_dtype
    )

    out = pl.pallas_call(
        kernel,
        out_shape=jax.ShapeDtypeStruct((m_pad, d_pad), out_dtype),
        grid_spec=pltpu.PrefetchScalarGridSpec(
            num_scalar_prefetch=0,
            grid=(m_pad // tm,),
            in_specs=[
                pl.BlockSpec((tm, 3 * C), lambda i: (i, 0)),
                pl.BlockSpec((tm, F), lambda i: (i, 0)),
                pl.BlockSpec((K, d_pad), lambda i: (0, 0)),  # resident weight
            ],
            out_specs=pl.BlockSpec((tm, d_pad), lambda i: (i, 0)),
        ),
        compiler_params=pltpu.CompilerParams(
            dimension_semantics=("parallel",),
        ),
    )(x3, marks, w_fused)

    if m_pad != M:
        out = out[:M]
    if d_pad != D:
        out = out[:, :D]
    return out.reshape(B, L, D)


# ---------------------------------------------------------------------------
# Pure-JAX reference (mirrors the PyTorch forward semantics, full precision)
# ---------------------------------------------------------------------------
def reference(x, x_mark, params):
    hi = jax.lax.Precision.HIGHEST
    w_conv = params["w_conv"]  # (D, C, 3)
    x_prev = jnp.roll(x, 1, axis=1)
    x_next = jnp.roll(x, -1, axis=1)
    conv = (
        jnp.einsum("blc,dc->bld", x_prev, w_conv[:, :, 0], precision=hi)
        + jnp.einsum("blc,dc->bld", x, w_conv[:, :, 1], precision=hi)
        + jnp.einsum("blc,dc->bld", x_next, w_conv[:, :, 2], precision=hi)
    )
    table = params["table"]
    offsets = params["offsets_py"]
    temporal = jnp.zeros_like(conv)
    for f in range(x_mark.shape[-1]):
        temporal = temporal + jnp.take(table, x_mark[..., f] + offsets[f], axis=0)
    return conv + temporal  # dropout is identity in eval mode


if __name__ == "__main__":
    B, L, C_IN, D_MODEL = 2, 8, 4, 32

    key = jax.random.PRNGKey(0)
    k_w, k_x, k_m0, k_m1, k_m2, k_m3 = jax.random.split(key, 6)

    params = make_params(C_IN, D_MODEL, k_w)

    x = jax.random.normal(k_x, (B, L, C_IN), dtype=jnp.float32)
    month = jax.random.randint(k_m0, (B, L, 1), 0, 13, dtype=jnp.int32)
    day = jax.random.randint(k_m1, (B, L, 1), 0, 32, dtype=jnp.int32)
    weekday = jax.random.randint(k_m2, (B, L, 1), 0, 7, dtype=jnp.int32)
    hour = jax.random.randint(k_m3, (B, L, 1), 0, 24, dtype=jnp.int32)
    x_mark = jnp.concatenate([month, day, weekday, hour], axis=-1)  # (B, L, 4)

    ref = reference(x, x_mark, params)

    # Default (f32 MXU) path: tight tolerance.
    out = data_embedding_wo_pos(x, x_mark, params)
    out = jax.block_until_ready(out)
    np.testing.assert_allclose(np.asarray(out), np.asarray(ref), rtol=1e-5, atol=1e-5)

    # Optional bf16 MXU path (v7x/v6e compute-bound option): f32 accumulation,
    # looser tolerance as per review.
    out_bf16 = data_embedding_wo_pos(x, x_mark, params, compute_dtype=jnp.bfloat16)
    out_bf16 = jax.block_until_ready(out_bf16)
    np.testing.assert_allclose(
        np.asarray(out_bf16), np.asarray(ref), rtol=5e-2, atol=5e-2
    )

    print("KERNEL_OK")
</pallas_src>

<mosaic_0001>
module attributes {stable_mosaic.version = 11 : i64} {
  func.func @_embed_kernel(%arg0: i32, %arg1: memref<8x12xf32, #tpu.memory_space<vmem>>, %arg2: memref<8x4xi32, #tpu.memory_space<vmem>>, %arg3: memref<88x128xf32, #tpu.memory_space<vmem>>, %arg4: memref<8x128xf32, #tpu.memory_space<vmem>>) attributes {dimension_semantics = [#tpu.dimension_semantics<parallel>], iteration_bounds = array<i64: 2>, scalar_prefetch = 0 : i64, scratch_operands = 0 : i64, tpu.core_type = #tpu.core_type<tc>, window_params = [{transform_indices = @transform_0, window_bounds = array<i64: 8, 12>}, {transform_indices = @transform_1, window_bounds = array<i64: 8, 4>}, {pipeline_mode = #tpu.pipeline_mode<synchronous>, transform_indices = @transform_2, window_bounds = array<i64: 88, 128>}, {transform_indices = @transform_3, window_bounds = array<i64: 8, 128>}]} {
    %c0 = arith.constant 0 : index
    %c0_0 = arith.constant 0 : index
    %0 = vector.load %arg2[%c0, %c0_0] : memref<8x4xi32, #tpu.memory_space<vmem>>, vector<8x4xi32>
    %1 = tpu.iota {dimensions = array<i32: 1>} : vector<8x76xi32>
    %2 = vector.extract_strided_slice %0 {offsets = [0, 0], sizes = [8, 1], strides = [1, 1]} : vector<8x4xi32> to vector<8x1xi32>
    %c0_i32 = arith.constant 0 : i32
    %3 = vector.broadcast %c0_i32 : i32 to vector<8x1xi32>
    %4 = arith.addi %2, %3 : vector<8x1xi32>
    %5 = vector.broadcast %4 : vector<8x1xi32> to vector<8x76xi32>
    %6 = arith.cmpi eq, %1, %5 : vector<8x76xi32>
    %7 = vector.extract_strided_slice %0 {offsets = [0, 1], sizes = [8, 1], strides = [1, 1]} : vector<8x4xi32> to vector<8x1xi32>
    %c13_i32 = arith.constant 13 : i32
    %8 = vector.broadcast %c13_i32 : i32 to vector<8x1xi32>
    %9 = arith.addi %7, %8 : vector<8x1xi32>
    %10 = vector.broadcast %9 : vector<8x1xi32> to vector<8x76xi32>
    %11 = arith.cmpi eq, %1, %10 : vector<8x76xi32>
    %12 = arith.ori %6, %11 : vector<8x76xi1>
    %13 = vector.extract_strided_slice %0 {offsets = [0, 2], sizes = [8, 1], strides = [1, 1]} : vector<8x4xi32> to vector<8x1xi32>
    %c45_i32 = arith.constant 45 : i32
    %14 = vector.broadcast %c45_i32 : i32 to vector<8x1xi32>
    %15 = arith.addi %13, %14 : vector<8x1xi32>
    %16 = vector.broadcast %15 : vector<8x1xi32> to vector<8x76xi32>
    %17 = arith.cmpi eq, %1, %16 : vector<8x76xi32>
    %18 = arith.ori %12, %17 : vector<8x76xi1>
    %19 = vector.extract_strided_slice %0 {offsets = [0, 3], sizes = [8, 1], strides = [1, 1]} : vector<8x4xi32> to vector<8x1xi32>
    %c52_i32 = arith.constant 52 : i32
    %20 = vector.broadcast %c52_i32 : i32 to vector<8x1xi32>
    %21 = arith.addi %19, %20 : vector<8x1xi32>
    %22 = vector.broadcast %21 : vector<8x1xi32> to vector<8x76xi32>
    %23 = arith.cmpi eq, %1, %22 : vector<8x76xi32>
    %24 = arith.ori %18, %23 : vector<8x76xi1>
    %25 = arith.extui %24 : vector<8x76xi1> to vector<8x76xi32>
    %26 = arith.sitofp %25 : vector<8x76xi32> to vector<8x76xf32>
    %c0_1 = arith.constant 0 : index
    %c0_2 = arith.constant 0 : index
    %27 = vector.load %arg1[%c0_1, %c0_2] : memref<8x12xf32, #tpu.memory_space<vmem>>, vector<8x12xf32>
    %28 = tpu.concatenate %27, %26 in 1 : vector<8x12xf32>, vector<8x76xf32> -> vector<8x88xf32>
    %c0_3 = arith.constant 0 : index
    %c0_4 = arith.constant 0 : index
    %29 = vector.load %arg3[%c0_3, %c0_4] : memref<88x128xf32, #tpu.memory_space<vmem>>, vector<88x128xf32>
    %cst = arith.constant dense<0.000000e+00> : vector<8x128xf32>
    %30 = tpu.matmul %28, %29, %cst {dimension_numbers = #tpu.dot_dimension_numbers<[1], [0], [0], [1], [0, 0, 1, 1], [], []>} : vector<8x88xf32>, vector<88x128xf32>, vector<8x128xf32> -> vector<8x128xf32>
    %c0_5 = arith.constant 0 : index
    %c0_6 = arith.constant 0 : index
    %31 = vector.load %arg4[%c0_5, %c0_6] : memref<8x128xf32, #tpu.memory_space<vmem>>, vector<8x128xf32>
    tpu.vector_store %arg4[%c0_5, %c0_6], %30 {strides = array<i32>} : memref<8x128xf32, #tpu.memory_space<vmem>>, vector<8x128xf32>,
    return
  }
  func.func @transform_0(%arg0: i32) -> (i32, i32) {
    %c0_i32 = arith.constant 0 : i32
    %c0_i32_0 = arith.constant 0 : i32
    return %arg0, %c0_i32 : i32, i32
  }
  func.func @transform_1(%arg0: i32) -> (i32, i32) {
    %c0_i32 = arith.constant 0 : i32
    %c0_i32_0 = arith.constant 0 : i32
    return %arg0, %c0_i32 : i32, i32
  }
  func.func @transform_2(%arg0: i32) -> (i32, i32) {
    %c0_i32 = arith.constant 0 : i32
    %c0_i32_0 = arith.constant 0 : i32
    %c0_i32_1 = arith.constant 0 : i32
    return %c0_i32, %c0_i32_0 : i32, i32
  }
  func.func @transform_3(%arg0: i32) -> (i32, i32) {
    %c0_i32 = arith.constant 0 : i32
    %c0_i32_0 = arith.constant 0 : i32
    return %arg0, %c0_i32 : i32, i32
  }
}

</mosaic_0001>

<llo_original>
// kernel: tpu_custom_call.1
$region0: #{tpu_custom_call.1}
  #allocation0 [shape = 'u32[]', space=smem, size = 0x4, offset = 0x4, fixed_abs, tag = 'smem constant byte address 0x4 - core index']
  #allocation1 [shape = 'u32[72,128]{1,0:T(1,128)}', space=vmem, size = 0x9000, scoped, tag = 'internal scratch']
  %s0 = inlined_call_operand.vmem [shape: f32[16,12], index: 0, kind: input, shape index: {}]
  %s1 = inlined_call_operand.vmem [shape: s32[16,4], index: 1, kind: input, shape index: {}]
  %s2 = inlined_call_operand.hbm [shape: f32[88,128], index: 2, kind: input, shape index: {}]
  %s3 = inlined_call_operand.hbm [shape: f32[16,128], index: 3, kind: output, shape index: {}]
  %s4 = sld [smem:[#allocation0]]
  $region49: #{tpu_custom_call.1} parent=0
    _
  %s6 = ssub.s32 1, %s4
  %s7 = scalar_select 0, %s6, %s4
  $region1: #{tpu_custom_call.1} parent=0
    #allocation2 [shape = 'u8[45056]{0}', space=vmem, size = 0xb000, scoped, tag = 'input window, operand 2, single buffered']
    #allocation3 [shape = 's32[2]{0}', space=sflag, size = 0x8, scoped, tag = 'scoped memory for tpu_custom_call.1']
    #allocation4 [shape = 's32[2]{0}', space=sflag, size = 0x8, scoped, tag = 'scoped memory for tpu_custom_call.1']
    #allocation5 [shape = 'u8[8192]{0}', space=vmem, size = 0x2000, scoped, tag = 'output window, operand 0']
    %8 = vsyncpa [#allocation3], 0
    %9 = vsyncpa [#allocation4], 0
    %s10 = scalar_lea.sflag [#allocation4], 1
    %11 = vsyncpa %s10, 0
    loop: start=0, step=1, limit=4
    $region2: #{tpu_custom_call.1} parent=1 // loop_pre_header
      _
    $region3: #{tpu_custom_call.1} parent=1 // loop_header
      %s13 = sphi 0, %s17
      %p14 = scmp.ge.s32.totalorder %s13, 4
      %s23 = sphi 0, %s25
      %s26 = sphi 0, %s23
      %s27 = sphi 0, %s26
      %s43 = sphi 0, %s27
      %s49 = sphi 0, %s51
      %s52 = sphi 0, %s49
      %s53 = sphi 0, %s52
      %s69 = sphi 0, %s53
      %s73 = sphi 0, %s73
      %s75 = sphi 0, %s73
      %s76 = sphi 0, %s75
      %s90 = sphi 0, %s76
      %s96 = sphi 0, %s98
      %s99 = sphi 0, %s96
      %s100 = sphi 0, %s99
      %s116 = sphi 0, %s100
    $region4: #{tpu_custom_call.1} parent=1 // loop_header_branch
      %16 = sbr.rel (%p14) target = $region8
    $region5: #{tpu_custom_call.1} parent=1 // loop_body
      %s18 = ssub.s32 %s13, 1
      %s19 = ssub.s32 %s13, 2
      %s20 = sadd.s32 %s13, 1
      %s21 = ssub.s32 %s13, %s20
      %p22 = scmp.eq.s32.totalorder %s21, 0
      %s24 = sadd.s32 %s23, 1
      %s25 = scalar_select %p22, %s23, %s24
      %p28 = pneg %p22
      %p29 = scmp.eq.s32.totalorder %s13, 1
      %p30 = por %p28, %p29
      %p31 = scmp.ne.s32.totalorder %s23, %s26
      %p32 = scmp.eq.s32.totalorder %s13, 0
      %p33 = por %p31, %p32
      %p34 = scmp.ne.s32.totalorder %s23, %s26
      %p35 = scmp.eq.s32.totalorder %s18, 1
      %p36 = por %p34, %p35
      %p37 = scmp.ne.s32.totalorder %s26, %s27
      %p38 = scmp.eq.s32.totalorder %s18, 0
      %p39 = por %p37, %p38
      %p40 = scmp.ne.s32.totalorder %s26, %s27
      %p41 = scmp.eq.s32.totalorder %s19, 1
      %p42 = por %p40, %p41
      %p44 = scmp.ne.s32.totalorder %s27, %s43
      %p45 = scmp.eq.s32.totalorder %s19, 0
      %p46 = por %p44, %p45
      %s47 = ssub.s32 %s13, %s20
      %p48 = scmp.eq.s32.totalorder %s47, 0
      %s50 = sadd.s32 %s49, 1
      %s51 = scalar_select %p48, %s49, %s50
      %p54 = pneg %p48
      %p55 = scmp.eq.s32.totalorder %s13, 1
      %p56 = por %p54, %p55
      %p57 = scmp.ne.s32.totalorder %s49, %s52
      %p58 = scmp.eq.s32.totalorder %s13, 0
      %p59 = por %p57, %p58
      %p60 = scmp.ne.s32.totalorder %s49, %s52
      %p61 = scmp.eq.s32.totalorder %s18, 1
      %p62 = por %p60, %p61
      %p63 = scmp.ne.s32.totalorder %s52, %s53
      %p64 = scmp.eq.s32.totalorder %s18, 0
      %p65 = por %p63, %p64
      %p66 = scmp.ne.s32.totalorder %s52, %s53
      %p67 = scmp.eq.s32.totalorder %s19, 1
      %p68 = por %p66, %p67
      %p70 = scmp.ne.s32.totalorder %s53, %s69
      %p71 = scmp.eq.s32.totalorder %s19, 0
      %p72 = por %p70, %p71
      %s74 = sadd.s32 %s73, 1
      %p77 = scmp.eq.s32.totalorder %s13, 1
      %p78 = scmp.ne.s32.totalorder %s73, %s75
      %p79 = scmp.eq.s32.totalorder %s13, 0
      %p80 = por %p78, %p79
      %p81 = scmp.ne.s32.totalorder %s73, %s75
      %p82 = scmp.eq.s32.totalorder %s18, 1
      %p83 = por %p81, %p82
      %p84 = scmp.ne.s32.totalorder %s75, %s76
      %p85 = scmp.eq.s32.totalorder %s18, 0
      %p86 = por %p84, %p85
      %p87 = scmp.ne.s32.totalorder %s75, %s76
      %p88 = scmp.eq.s32.totalorder %s19, 1
      %p89 = por %p87, %p88
      %p91 = scmp.ne.s32.totalorder %s76, %s90
      %p92 = scmp.eq.s32.totalorder %s19, 0
      %p93 = por %p91, %p92
      %s94 = ssub.s32 %s13, %s20
      %p95 = scmp.eq.s32.totalorder %s94, 0
      %s97 = sadd.s32 %s96, 1
      %s98 = scalar_select %p95, %s96, %s97
      %p101 = pneg %p95
      %p102 = scmp.eq.s32.totalorder %s13, 1
      %p103 = por %p101, %p102
      %p104 = scmp.ne.s32.totalorder %s96, %s99
      %p105 = scmp.eq.s32.totalorder %s13, 0
      %p106 = por %p104, %p105
      %p107 = scmp.ne.s32.totalorder %s96, %s99
      %p108 = scmp.eq.s32.totalorder %s18, 1
      %p109 = por %p107, %p108
      %p110 = scmp.ne.s32.totalorder %s99, %s100
      %p111 = scmp.eq.s32.totalorder %s18, 0
      %p112 = por %p110, %p111
      %p113 = scmp.ne.s32.totalorder %s99, %s100
      %p114 = scmp.eq.s32.totalorder %s19, 1
      %p115 = por %p113, %p114
      %p117 = scmp.ne.s32.totalorder %s100, %s116
      %p118 = scmp.eq.s32.totalorder %s19, 0
      %p119 = por %p117, %p118
      %p120 = scmp.le.s32.totalorder 1, %s13
      %p121 = scmp.lt.s32.totalorder %s13, 3
      %p122 = pnand %p120, %p121
      %p123 = pneg %p122
      // Predicated region
      $region9: #{tpu_custom_call.1} parent=5 // pred_check
        _
      $region10: #{tpu_custom_call.1} parent=5 // pred_check_branch
        %125 = sbr.rel (%p122) target = $region12
      $region11: #{tpu_custom_call.1} parent=5 // pred_region
        %s126 = ssub.s32 %s13, 1
        // Predicated region
        $region13: #{tpu_custom_call.1} parent=11 // pred_check
          %p127 = pneg %p86
        $region14: #{tpu_custom_call.1} parent=11 // pred_check_branch
          %129 = sbr.rel (%p127) target = $region16
        $region15: #{tpu_custom_call.1} parent=11 // pred_region
          %131 = vsyncadd [#allocation3], 0
          %s132 = sshll.u32 %s2, 4
          %s133 = int_to_ptr.hbm [resolvable:$true] %s132
          %s134 = sshll.u32 [#allocation2], 4
          %s135 = int_to_ptr.vmem [resolvable:$true] %s134
          %140 = dma.hbm_to_vmem [thread:$0]  %s133, 1408, %s135, [#allocation3], 128, 128, 8
        $region16: #{tpu_custom_call.1} parent=11 // pred_fallthru
          _
      $region12: #{tpu_custom_call.1} parent=5 // pred_fallthru
        _
      %p141 = scmp.lt.s32.totalorder %s13, 2
      // Predicated region
      $region17: #{tpu_custom_call.1} parent=5 // pred_check
        %p142 = pneg %p141
      $region18: #{tpu_custom_call.1} parent=5 // pred_check_branch
        %144 = sbr.rel (%p142) target = $region20
      $region19: #{tpu_custom_call.1} parent=5 // pred_region
        // Predicated region
        $region21: #{tpu_custom_call.1} parent=19 // pred_check
          %p145 = pneg %p33
        $region22: #{tpu_custom_call.1} parent=19 // pred_check_branch
          %147 = sbr.rel (%p145) target = $region24
        $region23: #{tpu_custom_call.1} parent=19 // pred_region
          %p148 = scmp.lt.s32.totalorder %s13, 1
          %s149 = scalar_select %p148, %s13, 1
          %s150 = smul.addr %s149, 8
          %s151 = scalar_lea.vmem %s0, %s150
        $region24: #{tpu_custom_call.1} parent=19 // pred_fallthru
          _
        // Predicated region
        $region25: #{tpu_custom_call.1} parent=19 // pred_check
          %p152 = pneg %p59
        $region26: #{tpu_custom_call.1} parent=19 // pred_check_branch
          %154 = sbr.rel (%p152) target = $region28
        $region27: #{tpu_custom_call.1} parent=19 // pred_region
          %p155 = scmp.lt.s32.totalorder %s13, 1
          %s156 = scalar_select %p155, %s13, 1
          %s157 = smul.addr %s156, 8
          %s158 = scalar_lea.vmem %s1, %s157
        $region28: #{tpu_custom_call.1} parent=19 // pred_fallthru
          _
      $region20: #{tpu_custom_call.1} parent=5 // pred_fallthru
        _
      %p159 = scmp.le.s32.totalorder 1, %s13
      %p160 = scmp.lt.s32.totalorder %s13, 3
      %p161 = pnand %p159, %p160
      %p162 = pneg %p161
      // Predicated region
      $region29: #{tpu_custom_call.1} parent=5 // pred_check
        _
      $region30: #{tpu_custom_call.1} parent=5 // pred_check_branch
        %164 = sbr.rel (%p161) target = $region32
      $region31: #{tpu_custom_call.1} parent=5 // pred_region
        %s165 = ssub.s32 %s13, 1
        // Predicated region
        $region33: #{tpu_custom_call.1} parent=31 // pred_check
          %p166 = pneg %p86
        $region34: #{tpu_custom_call.1} parent=31 // pred_check_branch
          %168 = sbr.rel (%p166) target = $region36
        $region35: #{tpu_custom_call.1} parent=31 // pred_region
          %170 = dma.done [#allocation3], 1408
        $region36: #{tpu_custom_call.1} parent=31 // pred_fallthru
          _
        %p171 = scmp.lt.s32.totalorder %s18, 1
        %s172 = scalar_select %p171, %s18, 1
        %s173 = smul.addr %s172, 8
        %s174 = scalar_lea.vmem %s0, %s173
        %p175 = pneg %p39
        %p176 = pneg %p36
        %p177 = scmp.lt.s32.totalorder %s18, 1
        %s178 = scalar_select %p177, %s18, 1
        %s179 = smul.addr %s178, 8
        %s180 = scalar_lea.vmem %s1, %s179
        %p181 = pneg %p65
        %p182 = pneg %p62
        %p183 = pneg %p86
        %p184 = pneg %p83
        %p185 = pneg %p112
        %p186 = pneg %p109
        %s187 = sand.u32 %s99, 1
        %s188 = scalar_lea.sflag [#allocation4], %s187
        %s189 = sand.u32 %s99, 1
        %s190 = smul.addr %s189, 8
        %s191 = scalar_lea.vmem [#allocation5], %s190
        %p192 = scmp.lt.s32.totalorder %s18, 1
        %s193 = scalar_select %p192, %s18, 1
        %s194 = smul.addr %s193, 8
        %s195 = scalar_lea.vmem %s0, %s194
        %p196 = scmp.lt.s32.totalorder %s18, 1
        %s197 = scalar_select %p196, %s18, 1
        %s198 = smul.addr %s197, 8
        %s199 = scalar_lea.vmem %s1, %s198
        %v200 = vld [vmem:[%s199] sm:$0xff]
        %v201 = vlaneseq
        %v202 = vand.u32 %v201, 127
        %203 = vset.pattern.permute.xlu0 0
        %204 = vperm.xlu0 %203, %v200
        %v205 = vpop.permute.xlu0 %204
        %vm206 = vcmp.eq.s32.totalorder %v202, %v205
        %v207 = vadd.s32 %v200, 13
        %208 = vset.pattern.permute.xlu0 1
        %209 = vperm.xlu0 %208, %v207
        %v210 = vpop.permute.xlu0 %209
        %vm211 = vcmp.eq.s32.totalorder %v202, %v210
        %vm212 = vmor %vm206, %vm211
        %v213 = vadd.s32 %v200, 45
        %214 = vset.pattern.permute.xlu0 2
        %215 = vperm.xlu0 %214, %v213
        %v216 = vpop.permute.xlu0 %215
        %vm217 = vcmp.eq.s32.totalorder %v202, %v216
        %vm218 = vmor %vm212, %vm217
        %v219 = vadd.s32 %v200, 52
        %220 = vset.pattern.permute.xlu0 3
        %221 = vperm.xlu0 %220, %v219
        %v222 = vpop.permute.xlu0 %221
        %vm223 = vcmp.eq.s32.totalorder %v202, %v222
        %vm224 = vmor %vm218, %vm223
        %v225 = vsel %vm224, 1, 0
        %v226 = vcvt.s32.f32 %v225
        %v227 = vld [vmem:[%s195] sm:$0xff]
        %229 = vrot.lane.b32.xlu0 %v226, 12
        %v230 = vpop.permute.xlu0 %229
        %vm232 = vcmask 97280
        %v233 = vsel %vm232, %v227, %v230
        %v234 = vld [vmem:[#allocation2] sm:$0xff]
        %v235 = vld [vmem:[#allocation2 + $0x8] sm:$0xff]
        %v236 = vld [vmem:[#allocation2 + $0x10] sm:$0xff]
        %v237 = vld [vmem:[#allocation2 + $0x18] sm:$0xff]
        %v238 = vld [vmem:[#allocation2 + $0x20] sm:$0xff]
        %v239 = vld [vmem:[#allocation2 + $0x28] sm:$0xff]
        %v240 = vld [vmem:[#allocation2 + $0x30] sm:$0xff]
        %v241 = vld [vmem:[#allocation2 + $0x38] sm:$0xff]
        %v242 = vld [vmem:[#allocation2 + $0x40] sm:$0xff]
        %v243 = vld [vmem:[#allocation2 + $0x48] sm:$0xff]
        %v244 = vld [vmem:[#allocation2 + $0x50] sm:$0xff]
        %vm245 = vcmask 719872
        %v247 = vsel %vm245, %v233, 0
        %249 = vmatpush.msra.mxu0 0.0
        %250 = vmatpush.msra.mxu0 0.0
        %251 = vmatpush.msra.mxu0 0.0
        %252 = vmatpush.msra.mxu0 0.0
        %253 = vmatpush.msra.mxu0 0.0
        %254 = vmatpush.msra.mxu0 %v244
        %255 = vmatpush.msra.mxu0 %v243
        %256 = vmatpush.msra.mxu0 %v242
        %257 = vmatpush.msra.mxu0 %v241
        %258 = vmatpush.msra.mxu0 %v240
        %259 = vmatpush.msra.mxu0 %v239
        %260 = vmatpush.msra.mxu0 %v238
        %261 = vmatpush.msra.mxu0 %v237
        %262 = vmatpush.msra.mxu0 %v236
        %263 = vmatpush.msra.mxu0 %v235
        %264 = vmatpush.msra.mxu0 %v234
        %265 = vmatmul.f32.gmra.mxu0 %v247
        %v266 = vpop.f32.mrf.mxu0
        %v267 = vadd.f32 0.0, %v266
        %268 = vdwg.mxu0
        %269 = vst [vmem:[%s191] sm:$0xff] %v267
        %s270 = sand.u32 %s99, 1
        %s271 = scalar_lea.sflag [#allocation4], %s270
        %s272 = sand.u32 %s99, 1
        %s273 = smul.addr %s272, 8
        %s274 = scalar_lea.vmem [#allocation5], %s273
        // Predicated region
        $region37: #{tpu_custom_call.1} parent=31 // pred_check
          %p275 = pneg %p109
        $region38: #{tpu_custom_call.1} parent=31 // pred_check_branch
          %277 = sbr.rel (%p275) target = $region40
        $region39: #{tpu_custom_call.1} parent=31 // pred_region
          %279 = vsyncadd %s271, 0
          %s280 = smul.addr %s18, 8
          %s281 = scalar_lea.hbm %s3, %s280
          %s283 = sshll.u32 %s274, 4
          %s284 = int_to_ptr.vmem [resolvable:$true] %s283
          %s285 = sshll.u32 %s281, 4
          %s286 = int_to_ptr.hbm [resolvable:$true] %s285
          %288 = dma.vmem_to_hbm [thread:$0]  %s284, 128, %s286, %s271
        $region40: #{tpu_custom_call.1} parent=31 // pred_fallthru
          _
      $region32: #{tpu_custom_call.1} parent=5 // pred_fallthru
        _
      %p289 = scmp.le.s32.totalorder 2, %s13
      // Predicated region
      $region41: #{tpu_custom_call.1} parent=5 // pred_check
        %p290 = pneg %p289
      $region42: #{tpu_custom_call.1} parent=5 // pred_check_branch
        %292 = sbr.rel (%p290) target = $region44
      $region43: #{tpu_custom_call.1} parent=5 // pred_region
        %s293 = ssub.s32 %s13, 2
        // Predicated region
        $region45: #{tpu_custom_call.1} parent=43 // pred_check
          %p294 = pneg %p115
        $region46: #{tpu_custom_call.1} parent=43 // pred_check_branch
          %296 = sbr.rel (%p294) target = $region48
        $region47: #{tpu_custom_call.1} parent=43 // pred_region
          %s297 = sand.u32 %s100, 1
          %s298 = scalar_lea.sflag [#allocation4], %s297
          %s299 = sand.u32 %s100, 1
          %s300 = smul.addr %s299, 8
          %s301 = scalar_lea.vmem [#allocation5], %s300
          %303 = dma.done %s298, 128
        $region48: #{tpu_custom_call.1} parent=43 // pred_fallthru
          _
      $region44: #{tpu_custom_call.1} parent=5 // pred_fallthru
        _
    $region6: #{tpu_custom_call.1} parent=1 // loop_footer
      %s17 = sadd.s32 1, %s13
    $region7: #{tpu_custom_call.1} parent=1 // loop_footer_branch
      %12 = sbr.rel target = $region3
    $region8: #{tpu_custom_call.1} parent=1 // loop_exit
      _
    %304 = vsyncpa [#allocation3], 1
    %s305 = scalar_lea.sflag [#allocation3], 1
    %306 = vsyncpa %s305, 1
    %307 = vsyncpa [#allocation4], 1
    %s308 = scalar_lea.sflag [#allocation4], 1
    %309 = vsyncpa %s308, 1

</llo_original>
